<compile_context>
chip_gen: v7x
topology: tpu7x:2x2x1
jax: 0.10.0
libtpu: 0.0.40
codegen_flags: <defaults>
</compile_context>

<pallas_src>
import jax
import jax.numpy as jnp
from jax import lax
from jax.experimental import pallas as pl
from jax.experimental.pallas import tpu as pltpu


def _make_kernel(N, C, TN):
    """Build the kernel closure over the static shapes."""
    num_tiles = pl.cdiv(N, TN)
    needs_mask = (N % TN) != 0
    inv_nc = 1.0 / float(N * C)   # global element count (NOT the block shape)
    inv_n = 1.0 / float(N)        # global batch size

    def kernel(eps_ref, p_ref, y_ref, out_ref, acc_bce, acc_poly):
        i = pl.program_id(0)

        @pl.when(i == 0)
        def _init():
            acc_bce[...] = jnp.zeros_like(acc_bce)
            acc_poly[...] = jnp.zeros_like(acc_poly)

        p = p_ref[...].astype(jnp.float32)   # probabilities in [0, 1]
        y = y_ref[...].astype(jnp.float32)   # labels (narrow dtype ok) -> float

        if needs_mask:
            # Ragged last tile: rows >= N are garbage in the padded block.
            # Sanitize to p=0, y=0 BEFORE any transcendental; those rows then
            # contribute exactly 0 to both the BCE sum and the poly1 sum.
            rows = i * TN + lax.broadcasted_iota(jnp.int32, (TN, 1), 0)
            valid = rows < N
            p = jnp.where(valid, p, 0.0)
            y = jnp.where(valid, y, 0.0)

        # --- softmax over the class axis (dim=1 == last dim for 2-D inputs) ---
        m = jnp.max(p, axis=-1, keepdims=True)
        e = jnp.exp(p - m)
        denom = jnp.sum(e, axis=-1, keepdims=True)
        sm = e * pl.reciprocal(denom, approx=False)   # exact: poly1 needs 1e-5 tol
        acc_poly[...] += y * sm                       # elementwise; row-sum deferred

        # --- binary_cross_entropy (probabilities), per-element ---
        logp = jnp.maximum(jnp.log(p), -100.0)        # torch's -100 clamp
        log1mp = jnp.maximum(jnp.log(1.0 - p), -100.0)
        acc_bce[...] += -(y * logp + (1.0 - y) * log1mp)

        @pl.when(i == num_tiles - 1)
        def _finalize():
            eps = eps_ref[0]
            bce_mean = jnp.sum(acc_bce[...]) * inv_nc
            poly_mean = jnp.sum(acc_poly[...]) * inv_n
            out_ref[0, 0] = bce_mean + eps * (1.0 - poly_mean)

    return kernel, num_tiles


def poly_bce(probs, labels, epsilon=1.0, block_rows=512):
    """Poly-BCE loss.  probs/labels are (N, C); returns a scalar float32 loss.

    block_rows: batch-tile height.  Keep 2 inputs x 2 pipeline buffers + 2 f32
    accumulators inside VMEM; halve it on v7x (64 MiB VMEM) for large C.
    """
    N, C = probs.shape
    assert labels.shape == (N, C)

    # Sublane-friendly tile (multiple of 16 covers bf16 labels); a single block
    # equal to the full batch is always legal when N <= block_rows.
    block_rows = max(16, (block_rows // 16) * 16)
    TN = N if N <= block_rows else block_rows

    kernel, num_tiles = _make_kernel(N, C, TN)
    eps = jnp.asarray([epsilon], dtype=jnp.float32)

    out = pl.pallas_call(
        kernel,
        out_shape=jax.ShapeDtypeStruct((1, 1), jnp.float32),
        grid=(num_tiles,),
        in_specs=[
            pl.BlockSpec(memory_space=pltpu.SMEM),        # epsilon scalar
            pl.BlockSpec((TN, C), lambda i: (i, 0)),      # probs tile  -> VMEM
            pl.BlockSpec((TN, C), lambda i: (i, 0)),      # labels tile -> VMEM
        ],
        out_specs=pl.BlockSpec(memory_space=pltpu.SMEM),  # scalar result
        scratch_shapes=[
            pltpu.VMEM((TN, C), jnp.float32),             # BCE partial accumulator
            pltpu.VMEM((TN, C), jnp.float32),             # poly1 partial accumulator
        ],
        compiler_params=pltpu.CompilerParams(
            # Running accumulators across the batch-tile axis => reduction axis.
            dimension_semantics=("arbitrary",),
        ),
    )(eps, probs, labels)
    return out[0, 0]


def poly_bce_ref(probs, labels, epsilon=1.0):
    """Pure-JAX reference mirroring the PyTorch module (defaults)."""
    labels = labels.astype(jnp.float32)
    sm = jax.nn.softmax(probs, axis=1)
    poly1 = jnp.sum(labels * sm, axis=-1)
    logp = jnp.maximum(jnp.log(probs), -100.0)
    log1mp = jnp.maximum(jnp.log(1.0 - probs), -100.0)
    bce = jnp.mean(-(labels * logp + (1.0 - labels) * log1mp))
    return jnp.mean(bce + epsilon * (1.0 - poly1))


if __name__ == "__main__":
    key = jax.random.PRNGKey(0)
    k1, k2 = jax.random.split(key)

    # Small shapes; N=40 with block_rows=16 exercises multi-tile accumulation
    # AND the ragged last tile (rows 40..47 masked).
    N, C = 40, 32
    probs = jax.random.uniform(k1, (N, C), dtype=jnp.float32,
                               minval=1e-3, maxval=1.0 - 1e-3)
    labels_f32 = jax.random.bernoulli(k2, 0.5, (N, C)).astype(jnp.float32)
    labels_bf16 = labels_f32.astype(jnp.bfloat16)   # narrow transport; 0/1 exact

    loss = poly_bce(probs, labels_bf16, epsilon=1.0, block_rows=16)
    jax.block_until_ready(loss)
    ref = poly_bce_ref(probs, labels_f32, epsilon=1.0)
    assert jnp.allclose(loss, ref, rtol=1e-5, atol=1e-5), (loss, ref)

    # Single-block path (N <= block_rows) with a different epsilon.
    loss2 = poly_bce(probs, labels_bf16, epsilon=0.5)
    jax.block_until_ready(loss2)
    ref2 = poly_bce_ref(probs, labels_f32, epsilon=0.5)
    assert jnp.allclose(loss2, ref2, rtol=1e-5, atol=1e-5), (loss2, ref2)

    print("KERNEL_OK")
</pallas_src>

<mosaic_0001>
module attributes {stable_mosaic.version = 11 : i64} {
  func.func @kernel(%arg0: i32, %arg1: memref<1xf32, #tpu.memory_space<smem>>, %arg2: memref<16x32xf32, #tpu.memory_space<vmem>>, %arg3: memref<16x32xbf16, #tpu.memory_space<vmem>>, %arg4: memref<1x1xf32, #tpu.memory_space<smem>>, %arg5: memref<16x32xf32, #tpu.memory_space<vmem>>, %arg6: memref<16x32xf32, #tpu.memory_space<vmem>>) attributes {dimension_semantics = [#tpu.dimension_semantics<arbitrary>], iteration_bounds = array<i64: 3>, scalar_prefetch = 0 : i64, scratch_operands = 2 : i64, tpu.core_type = #tpu.core_type<tc>, window_params = [{transform_indices = @transform_0, window_bounds = array<i64: 1>}, {transform_indices = @transform_1, window_bounds = array<i64: 16, 32>}, {transform_indices = @transform_2, window_bounds = array<i64: 16, 32>}, {transform_indices = @transform_3, window_bounds = array<i64: 1, 1>}]} {
    %c0_i32 = arith.constant 0 : i32
    %0 = arith.cmpi eq, %arg0, %c0_i32 : i32
    %1 = arith.extui %0 : i1 to i32
    %c0_i32_0 = arith.constant 0 : i32
    %2 = arith.cmpi ne, %1, %c0_i32_0 : i32
    scf.if %2 {
      %cst_21 = arith.constant 0.000000e+00 : f32
      %55 = vector.broadcast %cst_21 : f32 to vector<16x32xf32>
      %c0_22 = arith.constant 0 : index
      %c0_23 = arith.constant 0 : index
      %56 = vector.load %arg5[%c0_22, %c0_23] : memref<16x32xf32, #tpu.memory_space<vmem>>, vector<16x32xf32>
      tpu.vector_store %arg5[%c0_22, %c0_23], %55 {strides = array<i32>} : memref<16x32xf32, #tpu.memory_space<vmem>>, vector<16x32xf32>,
      %cst_24 = arith.constant 0.000000e+00 : f32
      %57 = vector.broadcast %cst_24 : f32 to vector<16x32xf32>
      %c0_25 = arith.constant 0 : index
      %c0_26 = arith.constant 0 : index
      %58 = vector.load %arg6[%c0_25, %c0_26] : memref<16x32xf32, #tpu.memory_space<vmem>>, vector<16x32xf32>
      tpu.vector_store %arg6[%c0_25, %c0_26], %57 {strides = array<i32>} : memref<16x32xf32, #tpu.memory_space<vmem>>, vector<16x32xf32>,
    } else {
    }
    %c0 = arith.constant 0 : index
    %c0_1 = arith.constant 0 : index
    %3 = vector.load %arg2[%c0, %c0_1] : memref<16x32xf32, #tpu.memory_space<vmem>>, vector<16x32xf32>
    %c0_2 = arith.constant 0 : index
    %c0_3 = arith.constant 0 : index
    %4 = vector.load %arg3[%c0_2, %c0_3] : memref<16x32xbf16, #tpu.memory_space<vmem>>, vector<16x32xbf16>
    %5 = arith.extf %4 : vector<16x32xbf16> to vector<16x32xf32>
    %c16_i32 = arith.constant 16 : i32
    %6 = arith.muli %arg0, %c16_i32 : i32
    %7 = tpu.iota {dimensions = array<i32: 0>} : vector<16x1xi32>
    %8 = vector.broadcast %6 : i32 to vector<16x1xi32>
    %9 = arith.addi %8, %7 : vector<16x1xi32>
    %c40_i32 = arith.constant 40 : i32
    %10 = vector.broadcast %c40_i32 : i32 to vector<16x1xi32>
    %11 = arith.cmpi slt, %9, %10 : vector<16x1xi32>
    %cst = arith.constant 0.000000e+00 : f32
    %12 = vector.shape_cast %11 : vector<16x1xi1> to vector<16x1xi1>
    %13 = vector.broadcast %12 : vector<16x1xi1> to vector<16x32xi1>
    %14 = vector.broadcast %cst : f32 to vector<16x32xf32>
    %15 = arith.select %13, %3, %14 : vector<16x32xi1>, vector<16x32xf32>
    %cst_4 = arith.constant 0.000000e+00 : f32
    %16 = vector.shape_cast %11 : vector<16x1xi1> to vector<16x1xi1>
    %17 = vector.broadcast %16 : vector<16x1xi1> to vector<16x32xi1>
    %18 = vector.broadcast %cst_4 : f32 to vector<16x32xf32>
    %19 = arith.select %17, %5, %18 : vector<16x32xi1>, vector<16x32xf32>
    %cst_5 = arith.constant dense<0xFF800000> : vector<16xf32>
    %20 = vector.multi_reduction <maximumf>, %15, %cst_5 [1] : vector<16x32xf32> to vector<16xf32>
    %21 = vector.shape_cast %20 : vector<16xf32> to vector<16x1xf32>
    %22 = vector.broadcast %21 : vector<16x1xf32> to vector<16x32xf32>
    %23 = arith.subf %15, %22 : vector<16x32xf32>
    %24 = math.exp %23 : vector<16x32xf32>
    %cst_6 = arith.constant dense<0.000000e+00> : vector<16xf32>
    %25 = vector.multi_reduction <add>, %24, %cst_6 [1] : vector<16x32xf32> to vector<16xf32>
    %26 = vector.shape_cast %25 : vector<16xf32> to vector<16x1xf32>
    %27 = tpu.reciprocal %26 : vector<16x1xf32> -> vector<16x1xf32>
    %28 = vector.broadcast %27 : vector<16x1xf32> to vector<16x32xf32>
    %29 = arith.mulf %24, %28 : vector<16x32xf32>
    %c0_7 = arith.constant 0 : index
    %c0_8 = arith.constant 0 : index
    %30 = vector.load %arg6[%c0_7, %c0_8] : memref<16x32xf32, #tpu.memory_space<vmem>>, vector<16x32xf32>
    %31 = arith.mulf %19, %29 : vector<16x32xf32>
    %32 = arith.addf %30, %31 : vector<16x32xf32>
    %c0_9 = arith.constant 0 : index
    %c0_10 = arith.constant 0 : index
    %33 = vector.load %arg6[%c0_9, %c0_10] : memref<16x32xf32, #tpu.memory_space<vmem>>, vector<16x32xf32>
    tpu.vector_store %arg6[%c0_9, %c0_10], %32 {strides = array<i32>} : memref<16x32xf32, #tpu.memory_space<vmem>>, vector<16x32xf32>,
    %34 = math.log %15 : vector<16x32xf32>
    %cst_11 = arith.constant -1.000000e+02 : f32
    %35 = vector.broadcast %cst_11 : f32 to vector<16x32xf32>
    %36 = arith.maximumf %34, %35 : vector<16x32xf32>
    %cst_12 = arith.constant 1.000000e+00 : f32
    %37 = vector.broadcast %cst_12 : f32 to vector<16x32xf32>
    %38 = arith.subf %37, %15 : vector<16x32xf32>
    %39 = math.log %38 : vector<16x32xf32>
    %cst_13 = arith.constant -1.000000e+02 : f32
    %40 = vector.broadcast %cst_13 : f32 to vector<16x32xf32>
    %41 = arith.maximumf %39, %40 : vector<16x32xf32>
    %c0_14 = arith.constant 0 : index
    %c0_15 = arith.constant 0 : index
    %42 = vector.load %arg5[%c0_14, %c0_15] : memref<16x32xf32, #tpu.memory_space<vmem>>, vector<16x32xf32>
    %43 = arith.mulf %19, %36 : vector<16x32xf32>
    %cst_16 = arith.constant 1.000000e+00 : f32
    %44 = vector.broadcast %cst_16 : f32 to vector<16x32xf32>
    %45 = arith.subf %44, %19 : vector<16x32xf32>
    %46 = arith.mulf %45, %41 : vector<16x32xf32>
    %47 = arith.addf %43, %46 : vector<16x32xf32>
    %cst_17 = arith.constant 0.000000e+00 : f32
    %48 = vector.broadcast %cst_17 : f32 to vector<16x32xf32>
    %49 = arith.subf %48, %47 : vector<16x32xf32>
    %50 = arith.addf %42, %49 : vector<16x32xf32>
    %c0_18 = arith.constant 0 : index
    %c0_19 = arith.constant 0 : index
    %51 = vector.load %arg5[%c0_18, %c0_19] : memref<16x32xf32, #tpu.memory_space<vmem>>, vector<16x32xf32>
    tpu.vector_store %arg5[%c0_18, %c0_19], %50 {strides = array<i32>} : memref<16x32xf32, #tpu.memory_space<vmem>>, vector<16x32xf32>,
    %c2_i32 = arith.constant 2 : i32
    %52 = arith.cmpi eq, %arg0, %c2_i32 : i32
    %53 = arith.extui %52 : i1 to i32
    %c0_i32_20 = arith.constant 0 : i32
    %54 = arith.cmpi ne, %53, %c0_i32_20 : i32
    scf.if %54 {
      %c0_21 = arith.constant 0 : index
      %55 = memref.load %arg1[%c0_21] : memref<1xf32, #tpu.memory_space<smem>>
      %c0_22 = arith.constant 0 : index
      %c0_23 = arith.constant 0 : index
      %56 = vector.load %arg5[%c0_22, %c0_23] : memref<16x32xf32, #tpu.memory_space<vmem>>, vector<16x32xf32>
      %57 = vector.shape_cast %56 : vector<16x32xf32> to vector<1x16x32xf32>
      %cst_24 = arith.constant dense<0.000000e+00> : vector<1xf32>
      %58 = vector.multi_reduction <add>, %57, %cst_24 [1, 2] : vector<1x16x32xf32> to vector<1xf32>
      %59 = vector.shape_cast %58 : vector<1xf32> to vector<1x1x1xf32>
      %60 = vector.extract %59[0, 0, 0] : f32 from vector<1x1x1xf32>
      %cst_25 = arith.constant 7.812500e-04 : f32
      %61 = arith.mulf %60, %cst_25 : f32
      %c0_26 = arith.constant 0 : index
      %c0_27 = arith.constant 0 : index
      %62 = vector.load %arg6[%c0_26, %c0_27] : memref<16x32xf32, #tpu.memory_space<vmem>>, vector<16x32xf32>
      %63 = vector.shape_cast %62 : vector<16x32xf32> to vector<1x16x32xf32>
      %cst_28 = arith.constant dense<0.000000e+00> : vector<1xf32>
      %64 = vector.multi_reduction <add>, %63, %cst_28 [1, 2] : vector<1x16x32xf32> to vector<1xf32>
      %65 = vector.shape_cast %64 : vector<1xf32> to vector<1x1x1xf32>
      %66 = vector.extract %65[0, 0, 0] : f32 from vector<1x1x1xf32>
      %cst_29 = arith.constant 2.500000e-02 : f32
      %67 = arith.mulf %66, %cst_29 : f32
      %cst_30 = arith.constant 1.000000e+00 : f32
      %68 = arith.subf %cst_30, %67 : f32
      %69 = arith.mulf %55, %68 : f32
      %70 = arith.addf %61, %69 : f32
      %c0_31 = arith.constant 0 : index
      %c0_32 = arith.constant 0 : index
      %71 = memref.load %arg4[%c0_31, %c0_32] : memref<1x1xf32, #tpu.memory_space<smem>>
      memref.store %70, %arg4[%c0_31, %c0_32] : memref<1x1xf32, #tpu.memory_space<smem>>
    } else {
    }
    return
  }
  func.func @transform_0(%arg0: i32) -> i32 {
    %c0_i32 = arith.constant 0 : i32
    %c0_i32_0 = arith.constant 0 : i32
    return %c0_i32 : i32
  }
  func.func @transform_1(%arg0: i32) -> (i32, i32) {
    %c0_i32 = arith.constant 0 : i32
    %c0_i32_0 = arith.constant 0 : i32
    return %arg0, %c0_i32 : i32, i32
  }
  func.func @transform_2(%arg0: i32) -> (i32, i32) {
    %c0_i32 = arith.constant 0 : i32
    %c0_i32_0 = arith.constant 0 : i32
    return %arg0, %c0_i32 : i32, i32
  }
  func.func @transform_3(%arg0: i32) -> (i32, i32) {
    %c0_i32 = arith.constant 0 : i32
    %c0_i32_0 = arith.constant 0 : i32
    %c0_i32_1 = arith.constant 0 : i32
    return %c0_i32, %c0_i32_0 : i32, i32
  }
}

</mosaic_0001>

<llo_original>
// kernel: tpu_custom_call.1
$region0: #{tpu_custom_call.1}
  #allocation0 [shape = 'u32[]', space=smem, size = 0x4, offset = 0x4, fixed_abs, tag = 'smem constant byte address 0x4 - core index']
  #allocation1 [shape = 'u32[144,128]{1,0:T(1,128)}', space=vmem, size = 0x12000, scoped, tag = 'internal scratch']
  #allocation2 [shape = 'f32[16,32]{1,0:T(8,128)}', space=vmem, size = 0x2000, scoped, tag = 'scratch operand']
  #allocation3 [shape = 'f32[16,32]{1,0:T(8,128)}', space=vmem, size = 0x2000, scoped, tag = 'scratch operand']
  #allocation4 [shape = 'f32[1]{0:T(128)S(6)}', space=smem, size = 0x200, scoped, tag = 'scoped memory for tpu_custom_call.1']
  %s0 = inlined_call_operand.<no memory space> [shape: f32[1], index: 0, kind: input, shape index: {}]
  %s1 = inlined_call_operand.vmem [shape: f32[40,32], index: 1, kind: input, shape index: {}]
  %s2 = inlined_call_operand.vmem [shape: bf16[40,32], index: 2, kind: input, shape index: {}]
  %s3 = inlined_call_operand.hbm [shape: f32[1,1], index: 3, kind: output, shape index: {}]
  %s4 = sld [smem:[#allocation0]]
  $region53: #{tpu_custom_call.1} parent=0
    _
  %s6 = ssub.s32 1, %s4
  %s7 = scalar_select 0, %s6, %s4
  %8 = sst [smem:[#allocation4]] %s0
  $region1: #{tpu_custom_call.1} parent=0
    #allocation5 [shape = 'u8[512]{0}', space=smem, size = 0x200, scoped, tag = 'output window, operand 0, single buffered']
    #allocation6 [shape = 's32[2]{0}', space=sflag, size = 0x8, scoped, tag = 'scoped memory for tpu_custom_call.1']
    %9 = vsyncpa [#allocation6], 0
    loop: start=0, step=1, limit=5
    $region2: #{tpu_custom_call.1} parent=1 // loop_pre_header
      _
    $region3: #{tpu_custom_call.1} parent=1 // loop_header
      %s11 = sphi 0, %s15
      %p12 = scmp.ge.s32.totalorder %s11, 5
      %s19 = sphi 0, %s19
      %s21 = sphi 0, %s19
      %s22 = sphi 0, %s21
      %s36 = sphi 0, %s22
      %s42 = sphi 0, %s44
      %s45 = sphi 0, %s42
      %s46 = sphi 0, %s45
      %s62 = sphi 0, %s46
      %s68 = sphi 0, %s70
      %s71 = sphi 0, %s68
      %s72 = sphi 0, %s71
      %s88 = sphi 0, %s72
      %s92 = sphi 0, %s92
      %s94 = sphi 0, %s92
      %s95 = sphi 0, %s94
      %s109 = sphi 0, %s95
    $region4: #{tpu_custom_call.1} parent=1 // loop_header_branch
      %14 = sbr.rel (%p12) target = $region8
    $region5: #{tpu_custom_call.1} parent=1 // loop_body
      %s16 = ssub.s32 %s11, 1
      %s17 = ssub.s32 %s11, 2
      %s18 = sadd.s32 %s11, 1
      %s20 = sadd.s32 %s19, 1
      %p23 = scmp.eq.s32.totalorder %s11, 2
      %p24 = scmp.ne.s32.totalorder %s19, %s21
      %p25 = scmp.eq.s32.totalorder %s11, 0
      %p26 = por %p24, %p25
      %p27 = scmp.ne.s32.totalorder %s19, %s21
      %p28 = scmp.eq.s32.totalorder %s16, 2
      %p29 = por %p27, %p28
      %p30 = scmp.ne.s32.totalorder %s21, %s22
      %p31 = scmp.eq.s32.totalorder %s16, 0
      %p32 = por %p30, %p31
      %p33 = scmp.ne.s32.totalorder %s21, %s22
      %p34 = scmp.eq.s32.totalorder %s17, 2
      %p35 = por %p33, %p34
      %p37 = scmp.ne.s32.totalorder %s22, %s36
      %p38 = scmp.eq.s32.totalorder %s17, 0
      %p39 = por %p37, %p38
      %s40 = ssub.s32 %s11, %s18
      %p41 = scmp.eq.s32.totalorder %s40, 0
      %s43 = sadd.s32 %s42, 1
      %s44 = scalar_select %p41, %s42, %s43
      %p47 = pneg %p41
      %p48 = scmp.eq.s32.totalorder %s11, 2
      %p49 = por %p47, %p48
      %p50 = scmp.ne.s32.totalorder %s42, %s45
      %p51 = scmp.eq.s32.totalorder %s11, 0
      %p52 = por %p50, %p51
      %p53 = scmp.ne.s32.totalorder %s42, %s45
      %p54 = scmp.eq.s32.totalorder %s16, 2
      %p55 = por %p53, %p54
      %p56 = scmp.ne.s32.totalorder %s45, %s46
      %p57 = scmp.eq.s32.totalorder %s16, 0
      %p58 = por %p56, %p57
      %p59 = scmp.ne.s32.totalorder %s45, %s46
      %p60 = scmp.eq.s32.totalorder %s17, 2
      %p61 = por %p59, %p60
      %p63 = scmp.ne.s32.totalorder %s46, %s62
      %p64 = scmp.eq.s32.totalorder %s17, 0
      %p65 = por %p63, %p64
      %s66 = ssub.s32 %s11, %s18
      %p67 = scmp.eq.s32.totalorder %s66, 0
      %s69 = sadd.s32 %s68, 1
      %s70 = scalar_select %p67, %s68, %s69
      %p73 = pneg %p67
      %p74 = scmp.eq.s32.totalorder %s11, 2
      %p75 = por %p73, %p74
      %p76 = scmp.ne.s32.totalorder %s68, %s71
      %p77 = scmp.eq.s32.totalorder %s11, 0
      %p78 = por %p76, %p77
      %p79 = scmp.ne.s32.totalorder %s68, %s71
      %p80 = scmp.eq.s32.totalorder %s16, 2
      %p81 = por %p79, %p80
      %p82 = scmp.ne.s32.totalorder %s71, %s72
      %p83 = scmp.eq.s32.totalorder %s16, 0
      %p84 = por %p82, %p83
      %p85 = scmp.ne.s32.totalorder %s71, %s72
      %p86 = scmp.eq.s32.totalorder %s17, 2
      %p87 = por %p85, %p86
      %p89 = scmp.ne.s32.totalorder %s72, %s88
      %p90 = scmp.eq.s32.totalorder %s17, 0
      %p91 = por %p89, %p90
      %s93 = sadd.s32 %s92, 1
      %p96 = scmp.eq.s32.totalorder %s11, 2
      %p97 = scmp.ne.s32.totalorder %s92, %s94
      %p98 = scmp.eq.s32.totalorder %s11, 0
      %p99 = por %p97, %p98
      %p100 = scmp.ne.s32.totalorder %s92, %s94
      %p101 = scmp.eq.s32.totalorder %s16, 2
      %p102 = por %p100, %p101
      %p103 = scmp.ne.s32.totalorder %s94, %s95
      %p104 = scmp.eq.s32.totalorder %s16, 0
      %p105 = por %p103, %p104
      %p106 = scmp.ne.s32.totalorder %s94, %s95
      %p107 = scmp.eq.s32.totalorder %s17, 2
      %p108 = por %p106, %p107
      %p110 = scmp.ne.s32.totalorder %s95, %s109
      %p111 = scmp.eq.s32.totalorder %s17, 0
      %p112 = por %p110, %p111
      %p113 = scmp.le.s32.totalorder 1, %s11
      %p114 = scmp.lt.s32.totalorder %s11, 4
      %p115 = pnand %p113, %p114
      %p116 = pneg %p115
      // Predicated region
      $region9: #{tpu_custom_call.1} parent=5 // pred_check
        _
      $region10: #{tpu_custom_call.1} parent=5 // pred_check_branch
        %118 = sbr.rel (%p115) target = $region12
      $region11: #{tpu_custom_call.1} parent=5 // pred_region
        %s119 = ssub.s32 %s11, 1
        // Predicated region
        $region13: #{tpu_custom_call.1} parent=11 // pred_check
          %p120 = pneg %p32
        $region14: #{tpu_custom_call.1} parent=11 // pred_check_branch
          %122 = sbr.rel (%p120) target = $region16
        $region15: #{tpu_custom_call.1} parent=11 // pred_region
          _
        $region16: #{tpu_custom_call.1} parent=11 // pred_fallthru
          _
      $region12: #{tpu_custom_call.1} parent=5 // pred_fallthru
        _
      %p123 = scmp.lt.s32.totalorder %s11, 3
      // Predicated region
      $region17: #{tpu_custom_call.1} parent=5 // pred_check
        %p124 = pneg %p123
      $region18: #{tpu_custom_call.1} parent=5 // pred_check_branch
        %126 = sbr.rel (%p124) target = $region20
      $region19: #{tpu_custom_call.1} parent=5 // pred_region
        // Predicated region
        $region21: #{tpu_custom_call.1} parent=19 // pred_check
          %p127 = pneg %p52
        $region22: #{tpu_custom_call.1} parent=19 // pred_check_branch
          %129 = sbr.rel (%p127) target = $region24
        $region23: #{tpu_custom_call.1} parent=19 // pred_region
          %s130 = smul.u32 2, %s11
          %s131 = ssub.s32 5, %s130
          %p132 = scmp.lt.s32.totalorder %s131, 2
          %s133 = scalar_select %p132, %s131, 2
          %s134 = smul.u32 128, %s133
          %p135 = scmp.lt.s32.totalorder %s130, 4
          %s136 = scalar_select %p135, %s130, 4
          %s137 = smul.addr %s136, 8
          %s138 = scalar_lea.vmem %s1, %s137
          %s139 = smul.u32 2, %s11
          %s140 = ssub.s32 5, %s139
          %p141 = scmp.lt.s32.totalorder %s140, 2
          %s142 = scalar_select %p141, %s140, 2
          %s143 = smul.u32 128, %s142
        $region24: #{tpu_custom_call.1} parent=19 // pred_fallthru
          _
        // Predicated region
        $region25: #{tpu_custom_call.1} parent=19 // pred_check
          %p144 = pneg %p78
        $region26: #{tpu_custom_call.1} parent=19 // pred_check_branch
          %146 = sbr.rel (%p144) target = $region28
        $region27: #{tpu_custom_call.1} parent=19 // pred_region
          %s147 = smul.u32 2, %s11
          %s148 = ssub.s32 5, %s147
          %p149 = scmp.lt.s32.totalorder %s148, 2
          %s150 = scalar_select %p149, %s148, 2
          %s151 = smul.u32 64, %s150
          %p152 = scmp.lt.s32.totalorder %s147, 4
          %s153 = scalar_select %p152, %s147, 4
          %s154 = smul.addr %s153, 4
          %s155 = scalar_lea.vmem %s2, %s154
          %s156 = smul.u32 2, %s11
          %s157 = ssub.s32 5, %s156
          %p158 = scmp.lt.s32.totalorder %s157, 2
          %s159 = scalar_select %p158, %s157, 2
          %s160 = smul.u32 64, %s159
        $region28: #{tpu_custom_call.1} parent=19 // pred_fallthru
          _
      $region20: #{tpu_custom_call.1} parent=5 // pred_fallthru
        _
      %p161 = scmp.le.s32.totalorder 1, %s11
      %p162 = scmp.lt.s32.totalorder %s11, 4
      %p163 = pnand %p161, %p162
      %p164 = pneg %p163
      // Predicated region
      $region29: #{tpu_custom_call.1} parent=5 // pred_check
        _
      $region30: #{tpu_custom_call.1} parent=5 // pred_check_branch
        %166 = sbr.rel (%p163) target = $region32
      $region31: #{tpu_custom_call.1} parent=5 // pred_region
        %s167 = ssub.s32 %s11, 1
        %p168 = pneg %p32
        %p169 = pneg %p29
        %s170 = smul.u32 2, %s16
        %s171 = ssub.s32 5, %s170
        %p172 = scmp.lt.s32.totalorder %s171, 2
        %s173 = scalar_select %p172, %s171, 2
        %s174 = smul.u32 128, %s173
        %p175 = scmp.lt.s32.totalorder %s170, 4
        %s176 = scalar_select %p175, %s170, 4
        %s177 = smul.addr %s176, 8
        %s178 = scalar_lea.vmem %s1, %s177
        %p179 = pneg %p58
        %p180 = pneg %p55
        %s181 = smul.u32 2, %s16
        %s182 = ssub.s32 5, %s181
        %p183 = scmp.lt.s32.totalorder %s182, 2
        %s184 = scalar_select %p183, %s182, 2
        %s185 = smul.u32 64, %s184
        %p186 = scmp.lt.s32.totalorder %s181, 4
        %s187 = scalar_select %p186, %s181, 4
        %s188 = smul.addr %s187, 4
        %s189 = scalar_lea.vmem %s2, %s188
        %p190 = pneg %p84
        %p191 = pneg %p81
        %p192 = pneg %p105
        %p193 = pneg %p102
        %s194 = smul.u32 2, %s16
        %s195 = ssub.s32 5, %s194
        %p196 = scmp.lt.s32.totalorder %s195, 2
        %s197 = scalar_select %p196, %s195, 2
        %s198 = smul.u32 128, %s197
        %p199 = scmp.lt.s32.totalorder %s194, 4
        %s200 = scalar_select %p199, %s194, 4
        %s201 = smul.addr %s200, 8
        %s202 = scalar_lea.vmem %s1, %s201
        %s203 = smul.u32 2, %s16
        %s204 = ssub.s32 5, %s203
        %p205 = scmp.lt.s32.totalorder %s204, 2
        %s206 = scalar_select %p205, %s204, 2
        %s207 = smul.u32 128, %s206
        %s208 = smul.u32 2, %s16
        %s209 = ssub.s32 5, %s208
        %p210 = scmp.lt.s32.totalorder %s209, 2
        %s211 = scalar_select %p210, %s209, 2
        %s212 = smul.u32 64, %s211
        %p213 = scmp.lt.s32.totalorder %s208, 4
        %s214 = scalar_select %p213, %s208, 4
        %s215 = smul.addr %s214, 4
        %s216 = scalar_lea.vmem %s2, %s215
        %s217 = smul.u32 2, %s16
        %s218 = ssub.s32 5, %s217
        %p219 = scmp.lt.s32.totalorder %s218, 2
        %s220 = scalar_select %p219, %s218, 2
        %s221 = smul.u32 64, %s220
        %p222 = scmp.eq.s32.totalorder %s16, 0
        // Predicated region
        $region33: #{tpu_custom_call.1} parent=31 // pred_check
          %p223 = pneg %p222
        $region34: #{tpu_custom_call.1} parent=31 // pred_check_branch
          %225 = sbr.rel (%p223) target = $region36
        $region35: #{tpu_custom_call.1} parent=31 // pred_region
          %vm226 = vcmask 261120
          %227 = vst.msk [vmem:[#allocation2] sm:$0xff] %vm226, 0.0
          %228 = vst.msk [vmem:[#allocation2 + $0x8] sm:$0xff] %vm226, 0.0
          %229 = vst.msk [vmem:[#allocation3] sm:$0xff] %vm226, 0.0
          %230 = vst.msk [vmem:[#allocation3 + $0x8] sm:$0xff] %vm226, 0.0
        $region36: #{tpu_custom_call.1} parent=31 // pred_fallthru
          _
        %v231 = vld [vmem:[%s202] sm:$0xff]
        %v232 = vld [vmem:[%s202 + $0x8] sm:$0xff]
        %v233 = vld [vmem:[%s216] sm:$0xf]
        %v234 = vld [vmem:[%s216 + $0x4] sm:$0xf]
        %v235 = vunpack.c.l.bf16 %v233
        %v236 = vunpack.c.l.bf16 %v234
        %s237 = smul.u32 %s16, 16
        %v238 = vlaneseq
        %v239 = vshrl.u32 %v238, 7
        %v240 = vadd.s32 %v239, 8
        %v241 = vstv %s237
        %v242 = vadd.s32 %v241, %v239
        %v243 = vadd.s32 %v241, %v240
        %vm244 = vcmp.lt.s32.totalorder %v242, 40
        %vm245 = vcmp.lt.s32.totalorder %v243, 40
        %v246 = vsel %vm244, 1, 0
        %v247 = vsel %vm245, 1, 0
        %vm248 = vcmp.eq.s32.totalorder %v246, 1
        %vm249 = vcmp.eq.s32.totalorder %v247, 1
        %v250 = vsel %vm248, %v231, 0.0
        %v251 = vsel %vm249, %v232, 0.0
        %v252 = vsel %vm248, %v235, 0.0
        %v253 = vsel %vm249, %v236, 0.0
        %vm254 = vcmask 261120
        %v255 = vsel %vm254, %v250, -inf
        %256 = vmax.xlane.f32.xlu0 %v255
        %v257 = vpop.xlane.xlu0 %256
        %v258 = vsel %vm254, %v251, -inf
        %259 = vmax.xlane.f32.xlu0 %v258
        %v260 = vpop.xlane.xlu0 %259
        %v261 = vsub.f32 %v250, %v257
        %v262 = vsub.f32 %v251, %v260
        %v263 = vmul.f32 %v261, 1.442695
        %v264 = vpow.pop %v263
        %v265 = vmul.f32 %v262, 1.442695
        %v266 = vpow.pop %v265
        %v267 = vsel %vm254, %v264, 0.0
        %268 = vadd.xlane.f32.xlu0 %v267
        %v269 = vpop.xlane.xlu0 %268
        %v270 = vsel %vm254, %v266, 0.0
        %271 = vadd.xlane.f32.xlu0 %v270
        %v272 = vpop.xlane.xlu0 %271
        %v273 = vrcp.pop %v269
        %v274 = vrcp.pop %v272
        %v275 = vmul.f32 %v264, %v273
        %v276 = vmul.f32 %v266, %v274
        %v277 = vld [vmem:[#allocation3] sm:$0xff]
        %v278 = vld [vmem:[#allocation3 + $0x8] sm:$0xff]
        %v279 = vmul.f32 %v252, %v275
        %v280 = vmul.f32 %v253, %v276
        %v281 = vadd.f32 %v277, %v279
        %v282 = vadd.f32 %v278, %v280
        %283 = vst.msk [vmem:[#allocation3] sm:$0xff] %vm254, %v281
        %284 = vst.msk [vmem:[#allocation3 + $0x8] sm:$0xff] %vm254, %v282
        %v285 = vlog2.pop %v250
        %v286 = vmul.f32 %v285, 0.6931472
        %v287 = vlog2.pop %v251
        %v288 = vmul.f32 %v287, 0.6931472
        %v289 = vmax.f32 %v286, -100.0
        %v290 = vmax.f32 %v288, -100.0
        %v291 = vsub.f32 1.0, %v250
        %v292 = vsub.f32 1.0, %v251
        %v293 = vlog2.pop %v291
        %v294 = vmul.f32 %v293, 0.6931472
        %v295 = vlog2.pop %v292
        %v296 = vmul.f32 %v295, 0.6931472
        %v297 = vmax.f32 %v294, -100.0
        %v298 = vmax.f32 %v296, -100.0
        %v299 = vld [vmem:[#allocation2] sm:$0xff]
        %v300 = vld [vmem:[#allocation2 + $0x8] sm:$0xff]
        %v301 = vmul.f32 %v252, %v289
        %v302 = vmul.f32 %v253, %v290
        %v303 = vsub.f32 1.0, %v252
        %v304 = vsub.f32 1.0, %v253
        %v305 = vmul.f32 %v303, %v297
        %v306 = vmul.f32 %v304, %v298
        %v307 = vadd.f32 %v301, %v305
        %v308 = vadd.f32 %v302, %v306
        %v309 = vsub.f32 0.0, %v307
        %v310 = vsub.f32 0.0, %v308
        %v311 = vadd.f32 %v299, %v309
        %v312 = vadd.f32 %v300, %v310
        %313 = vst.msk [vmem:[#allocation2] sm:$0xff] %vm254, %v311
        %314 = vst.msk [vmem:[#allocation2 + $0x8] sm:$0xff] %vm254, %v312
        %p315 = scmp.eq.s32.totalorder %s16, 2
        // Predicated region
        $region37: #{tpu_custom_call.1} parent=31 // pred_check
          %p316 = pneg %p315
        $region38: #{tpu_custom_call.1} parent=31 // pred_check_branch
          %318 = sbr.rel (%p316) target = $region40
        $region39: #{tpu_custom_call.1} parent=31 // pred_region
          %s319 = sld [smem:[#allocation4]]
          %v320 = vld [vmem:[#allocation2] sm:$0xff]
          %v321 = vld [vmem:[#allocation2 + $0x8] sm:$0xff]
          %v322 = vsel %vm254, %v320, 0.0
          %v323 = vsel %vm254, %v321, 0.0
          %v324 = vadd.f32 %v322, %v323
          %325 = vadd.xlane.f32.xlu0 %v324
          %v326 = vpop.xlane.xlu0 %325
          %v327 = vrot.slane %v326, 4
          %v328 = vadd.f32 %v326, %v327
          %v329 = vrot.slane %v328, 2
          %v330 = vadd.f32 %v328, %v329
          %v331 = vrot.slane %v330, 1
          %v332 = vadd.f32 %v330, %v331
          %s333 = vtos %v332
          %s334 = smul.f32 %s333, 0.00078125
          %v335 = vld [vmem:[#allocation3] sm:$0xff]
          %v336 = vld [vmem:[#allocation3 + $0x8] sm:$0xff]
          %v337 = vsel %vm254, %v335, 0.0
          %v338 = vsel %vm254, %v336, 0.0
          %v339 = vadd.f32 %v337, %v338
          %340 = vadd.xlane.f32.xlu0 %v339
          %v341 = vpop.xlane.xlu0 %340
          %v342 = vrot.slane %v341, 4
          %v343 = vadd.f32 %v341, %v342
          %v344 = vrot.slane %v343, 2
          %v345 = vadd.f32 %v343, %v344
          %v346 = vrot.slane %v345, 1
          %v347 = vadd.f32 %v345, %v346
          %s348 = vtos %v347
          %s349 = smul.f32 %s348, 0.025
          %s350 = ssub.f32 1.0, %s349
          %s351 = smul.f32 %s319, %s350
          %s352 = sadd.f32 %s334, %s351
          %s353 = scalar_lea.smem [#allocation5], 0
          %354 = sst [smem:[%s353]] %s352
        $region40: #{tpu_custom_call.1} parent=31 // pred_fallthru
          _
        // Predicated region
        $region41: #{tpu_custom_call.1} parent=31 // pred_check
          %p355 = pneg %p102
        $region42: #{tpu_custom_call.1} parent=31 // pred_check_branch
          %357 = sbr.rel (%p355) target = $region44
        $region43: #{tpu_custom_call.1} parent=31 // pred_region
          %s359 = ssub.s32 16, 16
          %360 = vsyncadd [#allocation6], %s359
          %363 = dma.smem_to_hbm [#allocation5], 16, %s3, [#allocation6]
        $region44: #{tpu_custom_call.1} parent=31 // pred_fallthru
          _
        // Predicated region
        $region45: #{tpu_custom_call.1} parent=31 // pred_check
          %p364 = pneg %p102
        $region46: #{tpu_custom_call.1} parent=31 // pred_check_branch
          %366 = sbr.rel (%p364) target = $region48
        $region47: #{tpu_custom_call.1} parent=31 // pred_region
          %367 = dma.done [#allocation6], 16
        $region48: #{tpu_custom_call.1} parent=31 // pred_fallthru
          _
        %368 = sfence
      $region32: #{tpu_custom_call.1} parent=5 // pred_fallthru
        _
      %p369 = scmp.le.s32.totalorder 2, %s11
      // Predicated region
      $region49: #{tpu_custom_call.1} parent=5 // pred_check
        %p370 = pneg %p369
      $region50: #{tpu_custom_call.1} parent=5 // pred_check_branch
        %372 = sbr.rel (%p370) target = $region52
      $region51: #{tpu_custom_call.1} parent=5 // pred_region
        %s373 = ssub.s32 %s11, 2
      $region52: #{tpu_custom_call.1} parent=5 // pred_fallthru
        _
    $region6: #{tpu_custom_call.1} parent=1 // loop_footer
      %s15 = sadd.s32 1, %s11
    $region7: #{tpu_custom_call.1} parent=1 // loop_footer_branch
      %10 = sbr.rel target = $region3
    $region8: #{tpu_custom_call.1} parent=1 // loop_exit
      _
    %374 = vsyncpa [#allocation6], 1
    %s375 = scalar_lea.sflag [#allocation6], 1
    %376 = vsyncpa %s375, 1

</llo_original>
